<compile_context>
chip_gen: v7x
topology: tpu7x:2x2x1
jax: 0.10.0
libtpu: 0.0.40
codegen_flags: <defaults>
</compile_context>

<pallas_src>
import math

import jax
import jax.numpy as jnp
from jax.experimental import pallas as pl
from jax.experimental.pallas import tpu as pltpu


H = 128            # padded hidden width (one full lane tile)
W_ROWS = 3 * H     # packed weight slab rows
W_COLS = 2 * H     # packed weight slab cols
B_ROWS = 8         # bias slab rows (one sublane tile)


def _round_up(n, m):
    return ((n + m - 1) // m) * m


def expectation_kernel(x_ref, aidx_ref, w_ref, b_ref, out_ref):
    cd = w_ref.dtype                      # MXU operand dtype (f32 or bf16)
    tb, sd = x_ref.shape                  # batch tile, padded state_dim

    x = x_ref[...].astype(cd)             # (TB, sd)

    # Static, tile-aligned slices of the packed weight slab.
    w1 = w_ref[0:sd, 0:H]                 # fc1 (only the rows x actually has)
    w2 = w_ref[0:H, H:2 * H]              # fc2
    we = w_ref[H:2 * H, 0:H]              # w_enc
    wa = w_ref[H:2 * H, H:2 * H]          # w_a
    wd3 = w_ref[2 * H:3 * H, 0:H]         # folded w_dec @ fc3
    w4 = w_ref[2 * H:3 * H, H:2 * H]      # fc4

    b1 = b_ref[0:1, 0:H]
    b2 = b_ref[0:1, H:2 * H]
    be = b_ref[1:2, 0:H]
    ba = b_ref[1:2, H:2 * H]
    bd3 = b_ref[2:3, 0:H]
    b4 = b_ref[2:3, H:2 * H]

    # fc1 + relu, fc2 + relu  (f32 accumulate on the MXU)
    h = jnp.maximum(jnp.dot(x, w1, preferred_element_type=jnp.float32) + b1, 0.0)
    h = jnp.maximum(
        jnp.dot(h.astype(cd), w2, preferred_element_type=jnp.float32) + b2, 0.0)

    # Two independent 128-wide dots (un-fused enc / action paths).
    h_enc = jnp.dot(h.astype(cd), we, preferred_element_type=jnp.float32) + be
    onehot = (jax.lax.broadcasted_iota(jnp.int32, (tb, H), 1)
              == aidx_ref[...]).astype(cd)                     # in-kernel one-hot
    a_enc = jnp.dot(onehot, wa, preferred_element_type=jnp.float32) + ba
    gated = h_enc * a_enc

    # folded (w_dec @ fc3) + relu, then fc4
    h = jnp.maximum(
        jnp.dot(gated.astype(cd), wd3, preferred_element_type=jnp.float32) + bd3, 0.0)
    y = jnp.dot(h.astype(cd), w4, preferred_element_type=jnp.float32) + b4

    out_ref[...] = y.astype(out_ref.dtype)


def pack_params(params, dtype=jnp.float32):
    """Fold Wd@W3, zero-pad to 128 lanes, pack weights into one (384, 256) slab
    (optionally bf16 for the MXU) and biases into a small (8, 256) f32 slab."""
    (w1, b1), (w2, b2), (we, be), (wa, ba), (wd, bd), (w3, b3), (w4, b4) = params

    # Fold w_dec and fc3 (no nonlinearity between them).
    wd3 = wd @ w3
    bd3 = bd @ w3 + b3

    def pad_w(w):
        return jnp.zeros((H, H), jnp.float32).at[: w.shape[0], : w.shape[1]].set(w)

    w_slab = jnp.concatenate(
        [
            jnp.concatenate([pad_w(w1), pad_w(w2)], axis=1),    # rows   0:128
            jnp.concatenate([pad_w(we), pad_w(wa)], axis=1),    # rows 128:256
            jnp.concatenate([pad_w(wd3), pad_w(w4)], axis=1),   # rows 256:384
        ],
        axis=0,
    ).astype(dtype)
    assert w_slab.shape == (W_ROWS, W_COLS)

    def pad_b(b):
        return jnp.zeros((H,), jnp.float32).at[: b.shape[0]].set(b)

    b_slab = jnp.zeros((B_ROWS, W_COLS), jnp.float32)
    b_slab = b_slab.at[0, :H].set(pad_b(b1)).at[0, H:].set(pad_b(b2))
    b_slab = b_slab.at[1, :H].set(pad_b(be)).at[1, H:].set(pad_b(ba))
    b_slab = b_slab.at[2, :H].set(pad_b(bd3)).at[2, H:].set(pad_b(b4))
    return w_slab, b_slab


def expectation_forward(x, a_idx, w_slab, b_slab, *, block_b=1024):
    """x: (B, state_dim) f32, a_idx: (B,) int action indices, slabs from pack_params."""
    B, sd = x.shape
    sd8 = _round_up(sd, 8)

    # Adaptive batch tile: minimize trailing-tile padding, keep >=2 parallel
    # grid steps for large batches so both TensorCores are used on v7x.
    n_tiles = pl.cdiv(B, block_b)
    if n_tiles < 2 and B >= 1024:
        n_tiles = 2
    TB = _round_up(pl.cdiv(B, n_tiles), 8)
    B_pad = n_tiles * TB

    if (B_pad, sd8) != (B, sd):
        xp = jnp.zeros((B_pad, sd8), x.dtype).at[:B, :sd].set(x)
    else:
        xp = x
    ai = a_idx.reshape(-1, 1).astype(jnp.int32)
    if B_pad != B:
        ai = jnp.zeros((B_pad, 1), jnp.int32).at[:B].set(ai)

    out = pl.pallas_call(
        expectation_kernel,
        out_shape=jax.ShapeDtypeStruct((B_pad, H), jnp.float32),
        grid=(n_tiles,),
        in_specs=[
            pl.BlockSpec((TB, sd8), lambda i: (i, 0)),            # x (narrow lanes)
            pl.BlockSpec((TB, 1), lambda i: (i, 0)),              # action index
            pl.BlockSpec((W_ROWS, W_COLS), lambda i: (0, 0)),     # weights, resident
            pl.BlockSpec((B_ROWS, W_COLS), lambda i: (0, 0)),     # biases, resident
        ],
        out_specs=pl.BlockSpec((TB, H), lambda i: (i, 0)),        # lane-dense output
        compiler_params=pltpu.CompilerParams(
            dimension_semantics=("parallel",),   # shard batch tiles across TCs
        ),
    )(xp, ai, w_slab, b_slab)

    return out[:B, :sd]


def init_params(key, state_dim, num_actions, hidden=10):
    """Mirrors ExpectationNetwork.init_weight(): nn.Linear weights xavier_uniform,
    biases 0; w_enc/w_a/w_dec weights uniform(-1,1). Stored as (in, out)."""
    keys = jax.random.split(key, 7)

    def xavier(k, fan_in, fan_out):
        limit = math.sqrt(6.0 / (fan_in + fan_out))
        w = jax.random.uniform(k, (fan_out, fan_in), jnp.float32, -limit, limit)
        return w.T

    def unif(k, fan_in, fan_out):
        w = jax.random.uniform(k, (fan_out, fan_in), jnp.float32, -1.0, 1.0)
        return w.T

    zeros = lambda n: jnp.zeros((n,), jnp.float32)

    return [
        (xavier(keys[0], state_dim, hidden), zeros(hidden)),     # fc1
        (xavier(keys[1], hidden, hidden), zeros(hidden)),        # fc2
        (unif(keys[2], hidden, hidden), zeros(hidden)),          # w_enc
        (unif(keys[3], num_actions, hidden), zeros(hidden)),     # w_a
        (unif(keys[4], hidden, hidden), zeros(hidden)),          # w_dec
        (xavier(keys[5], hidden, hidden), zeros(hidden)),        # fc3
        (xavier(keys[6], hidden, state_dim), zeros(state_dim)),  # fc4
    ]


def reference_forward(x, a, params):
    (w1, b1), (w2, b2), (we, be), (wa, ba), (wd, bd), (w3, b3), (w4, b4) = params
    h = jax.nn.relu(x @ w1 + b1)
    h = jax.nn.relu(h @ w2 + b2)
    h_enc = h @ we + be
    a_enc = a @ wa + ba
    h_dec = (h_enc * a_enc) @ wd + bd
    h = jax.nn.relu(h_dec @ w3 + b3)
    return h @ w4 + b4


if __name__ == "__main__":
    key = jax.random.PRNGKey(0)
    k_param, k_x, k_a, k_x2, k_a2 = jax.random.split(key, 5)

    batch = 8
    state_dim = 16
    num_actions = 4

    params = init_params(k_param, state_dim, num_actions)
    w_f32, b_f32 = pack_params(params, jnp.float32)

    # --- small batch: single grid step, no wrapper-side padding at all ---
    x = jax.random.normal(k_x, (batch, state_dim), jnp.float32)
    a_idx = jax.random.randint(k_a, (batch,), 0, num_actions)
    a_1h = jax.nn.one_hot(a_idx, num_actions, dtype=jnp.float32)

    out = jax.block_until_ready(expectation_forward(x, a_idx, w_f32, b_f32))
    ref = reference_forward(x, a_1h, params)
    assert out.shape == (batch, state_dim)
    assert jnp.allclose(out, ref, atol=1e-4, rtol=1e-4), "mismatch vs reference (B=8)"

    # --- larger batch: adaptive tile (grid=3, TB=840), padding path, megacore ---
    batch2 = 2500
    x2 = jax.random.normal(k_x2, (batch2, state_dim), jnp.float32)
    a2_idx = jax.random.randint(k_a2, (batch2,), 0, num_actions)
    a2_1h = jax.nn.one_hot(a2_idx, num_actions, dtype=jnp.float32)

    out2 = jax.block_until_ready(expectation_forward(x2, a2_idx, w_f32, b_f32))
    ref2 = reference_forward(x2, a2_1h, params)
    assert out2.shape == (batch2, state_dim)
    assert jnp.allclose(out2, ref2, atol=1e-4, rtol=1e-4), "mismatch vs reference (B=2500)"

    # --- bf16 MXU operands (v5e / v7x recommendation); loose tolerance vs f32 ref ---
    w_bf16, b_bf16 = pack_params(params, jnp.bfloat16)
    out_bf = jax.block_until_ready(expectation_forward(x2, a2_idx, w_bf16, b_bf16))
    assert jnp.allclose(out_bf, ref2, atol=3.5e-1, rtol=1e-1), "bf16 path diverged"

    print("KERNEL_OK")
</pallas_src>

<mosaic_0001>
module attributes {stable_mosaic.version = 11 : i64} {
  func.func @expectation_kernel(%arg0: i32, %arg1: memref<8x16xf32, #tpu.memory_space<vmem>>, %arg2: memref<8x1xi32, #tpu.memory_space<vmem>>, %arg3: memref<384x256xf32, #tpu.memory_space<vmem>>, %arg4: memref<8x256xf32, #tpu.memory_space<vmem>>, %arg5: memref<8x128xf32, #tpu.memory_space<vmem>>) attributes {dimension_semantics = [#tpu.dimension_semantics<parallel>], iteration_bounds = array<i64: 1>, scalar_prefetch = 0 : i64, scratch_operands = 0 : i64, tpu.core_type = #tpu.core_type<tc>, window_params = [{transform_indices = @transform_0, window_bounds = array<i64: 8, 16>}, {transform_indices = @transform_1, window_bounds = array<i64: 8, 1>}, {pipeline_mode = #tpu.pipeline_mode<synchronous>, transform_indices = @transform_2, window_bounds = array<i64: 384, 256>}, {pipeline_mode = #tpu.pipeline_mode<synchronous>, transform_indices = @transform_3, window_bounds = array<i64: 8, 256>}, {transform_indices = @transform_4, window_bounds = array<i64: 8, 128>}]} {
    %c0 = arith.constant 0 : index
    %c0_0 = arith.constant 0 : index
    %0 = vector.load %arg1[%c0, %c0_0] : memref<8x16xf32, #tpu.memory_space<vmem>>, vector<8x16xf32>
    %c0_1 = arith.constant 0 : index
    %c0_2 = arith.constant 0 : index
    %1 = vector.load %arg3[%c0_1, %c0_2] : memref<384x256xf32, #tpu.memory_space<vmem>>, vector<16x128xf32>
    %c0_3 = arith.constant 0 : index
    %c128 = arith.constant 128 : index
    %2 = vector.load %arg3[%c0_3, %c128] : memref<384x256xf32, #tpu.memory_space<vmem>>, vector<128x128xf32>
    %c128_4 = arith.constant 128 : index
    %c0_5 = arith.constant 0 : index
    %3 = vector.load %arg3[%c128_4, %c0_5] : memref<384x256xf32, #tpu.memory_space<vmem>>, vector<128x128xf32>
    %c128_6 = arith.constant 128 : index
    %c128_7 = arith.constant 128 : index
    %4 = vector.load %arg3[%c128_6, %c128_7] : memref<384x256xf32, #tpu.memory_space<vmem>>, vector<128x128xf32>
    %c256 = arith.constant 256 : index
    %c0_8 = arith.constant 0 : index
    %5 = vector.load %arg3[%c256, %c0_8] : memref<384x256xf32, #tpu.memory_space<vmem>>, vector<128x128xf32>
    %c256_9 = arith.constant 256 : index
    %c128_10 = arith.constant 128 : index
    %6 = vector.load %arg3[%c256_9, %c128_10] : memref<384x256xf32, #tpu.memory_space<vmem>>, vector<128x128xf32>
    %c0_11 = arith.constant 0 : index
    %c0_12 = arith.constant 0 : index
    %7 = vector.load %arg4[%c0_11, %c0_12] : memref<8x256xf32, #tpu.memory_space<vmem>>, vector<1x128xf32>
    %c0_13 = arith.constant 0 : index
    %c128_14 = arith.constant 128 : index
    %8 = vector.load %arg4[%c0_13, %c128_14] : memref<8x256xf32, #tpu.memory_space<vmem>>, vector<1x128xf32>
    %c1 = arith.constant 1 : index
    %c0_15 = arith.constant 0 : index
    %9 = vector.load %arg4[%c1, %c0_15] : memref<8x256xf32, #tpu.memory_space<vmem>>, vector<1x128xf32>
    %c1_16 = arith.constant 1 : index
    %c128_17 = arith.constant 128 : index
    %10 = vector.load %arg4[%c1_16, %c128_17] : memref<8x256xf32, #tpu.memory_space<vmem>>, vector<1x128xf32>
    %c2 = arith.constant 2 : index
    %c0_18 = arith.constant 0 : index
    %11 = vector.load %arg4[%c2, %c0_18] : memref<8x256xf32, #tpu.memory_space<vmem>>, vector<1x128xf32>
    %c2_19 = arith.constant 2 : index
    %c128_20 = arith.constant 128 : index
    %12 = vector.load %arg4[%c2_19, %c128_20] : memref<8x256xf32, #tpu.memory_space<vmem>>, vector<1x128xf32>
    %cst = arith.constant dense<0.000000e+00> : vector<8x128xf32>
    %13 = tpu.matmul %0, %1, %cst {dimension_numbers = #tpu.dot_dimension_numbers<[1], [0], [0], [1], [0, 0, 1, 1], [], []>} : vector<8x16xf32>, vector<16x128xf32>, vector<8x128xf32> -> vector<8x128xf32>
    %14 = vector.broadcast %7 : vector<1x128xf32> to vector<8x128xf32>
    %15 = arith.addf %13, %14 : vector<8x128xf32>
    %cst_21 = arith.constant 0.000000e+00 : f32
    %16 = vector.broadcast %cst_21 : f32 to vector<8x128xf32>
    %17 = arith.maximumf %15, %16 : vector<8x128xf32>
    %cst_22 = arith.constant dense<0.000000e+00> : vector<8x128xf32>
    %18 = tpu.matmul %17, %2, %cst_22 {dimension_numbers = #tpu.dot_dimension_numbers<[1], [0], [0], [1], [0, 0, 1, 1], [], []>} : vector<8x128xf32>, vector<128x128xf32>, vector<8x128xf32> -> vector<8x128xf32>
    %19 = vector.broadcast %8 : vector<1x128xf32> to vector<8x128xf32>
    %20 = arith.addf %18, %19 : vector<8x128xf32>
    %cst_23 = arith.constant 0.000000e+00 : f32
    %21 = vector.broadcast %cst_23 : f32 to vector<8x128xf32>
    %22 = arith.maximumf %20, %21 : vector<8x128xf32>
    %cst_24 = arith.constant dense<0.000000e+00> : vector<8x128xf32>
    %23 = tpu.matmul %22, %3, %cst_24 {dimension_numbers = #tpu.dot_dimension_numbers<[1], [0], [0], [1], [0, 0, 1, 1], [], []>} : vector<8x128xf32>, vector<128x128xf32>, vector<8x128xf32> -> vector<8x128xf32>
    %24 = vector.broadcast %9 : vector<1x128xf32> to vector<8x128xf32>
    %25 = arith.addf %23, %24 : vector<8x128xf32>
    %26 = tpu.iota {dimensions = array<i32: 1>} : vector<8x128xi32>
    %c0_25 = arith.constant 0 : index
    %c0_26 = arith.constant 0 : index
    %27 = vector.load %arg2[%c0_25, %c0_26] : memref<8x1xi32, #tpu.memory_space<vmem>>, vector<8x1xi32>
    %28 = vector.broadcast %27 : vector<8x1xi32> to vector<8x128xi32>
    %29 = arith.cmpi eq, %26, %28 : vector<8x128xi32>
    %30 = arith.extui %29 : vector<8x128xi1> to vector<8x128xi32>
    %31 = arith.sitofp %30 : vector<8x128xi32> to vector<8x128xf32>
    %cst_27 = arith.constant dense<0.000000e+00> : vector<8x128xf32>
    %32 = tpu.matmul %31, %4, %cst_27 {dimension_numbers = #tpu.dot_dimension_numbers<[1], [0], [0], [1], [0, 0, 1, 1], [], []>} : vector<8x128xf32>, vector<128x128xf32>, vector<8x128xf32> -> vector<8x128xf32>
    %33 = vector.broadcast %10 : vector<1x128xf32> to vector<8x128xf32>
    %34 = arith.addf %32, %33 : vector<8x128xf32>
    %35 = arith.mulf %25, %34 : vector<8x128xf32>
    %cst_28 = arith.constant dense<0.000000e+00> : vector<8x128xf32>
    %36 = tpu.matmul %35, %5, %cst_28 {dimension_numbers = #tpu.dot_dimension_numbers<[1], [0], [0], [1], [0, 0, 1, 1], [], []>} : vector<8x128xf32>, vector<128x128xf32>, vector<8x128xf32> -> vector<8x128xf32>
    %37 = vector.broadcast %11 : vector<1x128xf32> to vector<8x128xf32>
    %38 = arith.addf %36, %37 : vector<8x128xf32>
    %cst_29 = arith.constant 0.000000e+00 : f32
    %39 = vector.broadcast %cst_29 : f32 to vector<8x128xf32>
    %40 = arith.maximumf %38, %39 : vector<8x128xf32>
    %cst_30 = arith.constant dense<0.000000e+00> : vector<8x128xf32>
    %41 = tpu.matmul %40, %6, %cst_30 {dimension_numbers = #tpu.dot_dimension_numbers<[1], [0], [0], [1], [0, 0, 1, 1], [], []>} : vector<8x128xf32>, vector<128x128xf32>, vector<8x128xf32> -> vector<8x128xf32>
    %42 = vector.broadcast %12 : vector<1x128xf32> to vector<8x128xf32>
    %43 = arith.addf %41, %42 : vector<8x128xf32>
    %c0_31 = arith.constant 0 : index
    %c0_32 = arith.constant 0 : index
    %44 = vector.load %arg5[%c0_31, %c0_32] : memref<8x128xf32, #tpu.memory_space<vmem>>, vector<8x128xf32>
    tpu.vector_store %arg5[%c0_31, %c0_32], %43 {strides = array<i32>} : memref<8x128xf32, #tpu.memory_space<vmem>>, vector<8x128xf32>,
    return
  }
  func.func @transform_0(%arg0: i32) -> (i32, i32) {
    %c0_i32 = arith.constant 0 : i32
    %c0_i32_0 = arith.constant 0 : i32
    return %arg0, %c0_i32 : i32, i32
  }
  func.func @transform_1(%arg0: i32) -> (i32, i32) {
    %c0_i32 = arith.constant 0 : i32
    %c0_i32_0 = arith.constant 0 : i32
    return %arg0, %c0_i32 : i32, i32
  }
  func.func @transform_2(%arg0: i32) -> (i32, i32) {
    %c0_i32 = arith.constant 0 : i32
    %c0_i32_0 = arith.constant 0 : i32
    %c0_i32_1 = arith.constant 0 : i32
    return %c0_i32, %c0_i32_0 : i32, i32
  }
  func.func @transform_3(%arg0: i32) -> (i32, i32) {
    %c0_i32 = arith.constant 0 : i32
    %c0_i32_0 = arith.constant 0 : i32
    %c0_i32_1 = arith.constant 0 : i32
    return %c0_i32, %c0_i32_0 : i32, i32
  }
  func.func @transform_4(%arg0: i32) -> (i32, i32) {
    %c0_i32 = arith.constant 0 : i32
    %c0_i32_0 = arith.constant 0 : i32
    return %arg0, %c0_i32 : i32, i32
  }
}

</mosaic_0001>

<llo_original>
// kernel: tpu_custom_call.1
$region0: #{tpu_custom_call.1}
  #allocation0 [shape = 'u32[]', space=smem, size = 0x4, offset = 0x4, fixed_abs, tag = 'smem constant byte address 0x4 - core index']
  #allocation1 [shape = 'u32[144,128]{1,0:T(1,128)}', space=vmem, size = 0x12000, scoped, tag = 'internal scratch']
  %s0 = inlined_call_operand.hbm [shape: f32[8,16], index: 0, kind: input, shape index: {}]
  %s1 = inlined_call_operand.vmem [shape: s32[8,1], index: 1, kind: input, shape index: {}]
  %s2 = inlined_call_operand.hbm [shape: f32[384,256], index: 2, kind: input, shape index: {}]
  %s3 = inlined_call_operand.vmem [shape: f32[8,256], index: 3, kind: input, shape index: {}]
  %s4 = inlined_call_operand.hbm [shape: f32[8,128], index: 4, kind: output, shape index: {}]
  %s5 = sld [smem:[#allocation0]]
  $region34: #{tpu_custom_call.1} parent=0
    _
  %s7 = ssub.s32 1, %s5
  %s8 = scalar_select 0, %s7, %s5
  $region1: #{tpu_custom_call.1} parent=0
    #allocation2 [shape = 'u8[4096]{0}', space=vmem, size = 0x1000, scoped, tag = 'input window, operand 0, single buffered']
    #allocation3 [shape = 's32[1]{0}', space=sflag, size = 0x4, scoped, tag = 'scoped memory for tpu_custom_call.1']
    #allocation4 [shape = 's32[1]{0}', space=sflag, size = 0x4, scoped, tag = 'scoped memory for tpu_custom_call.1']
    #allocation5 [shape = 'u8[393216]{0}', space=vmem, size = 0x60000, scoped, tag = 'input window, operand 2, single buffered']
    #allocation6 [shape = 's32[1]{0}', space=sflag, size = 0x4, scoped, tag = 'scoped memory for tpu_custom_call.1']
    #allocation7 [shape = 'u8[4096]{0}', space=vmem, size = 0x1000, scoped, tag = 'output window, operand 0, single buffered']
    %9 = vsyncpa [#allocation3], 0
    %10 = vsyncpa [#allocation6], 0
    %11 = vsyncpa [#allocation4], 0
    // Predicated region
    $region2: #{tpu_custom_call.1} parent=1 // pred_check
      _
    $region3: #{tpu_custom_call.1} parent=1 // pred_check_branch
      %13 = sbr.rel (0) target = $region5
    $region4: #{tpu_custom_call.1} parent=1 // pred_region
      %s15 = ssub.s32 128, 128
      %16 = vsyncadd [#allocation3], %s15
      %s18 = sshll.u32 [#allocation2], 4
      %s19 = int_to_ptr.vmem [resolvable:$true] %s18
      %21 = dma.hbm_to_vmem [thread:$0]  %s0, 128, %s19, [#allocation3]
    $region5: #{tpu_custom_call.1} parent=1 // pred_fallthru
      _
    // Predicated region
    $region6: #{tpu_custom_call.1} parent=1 // pred_check
      _
    $region7: #{tpu_custom_call.1} parent=1 // pred_check_branch
      %23 = sbr.rel (0) target = $region9
    $region8: #{tpu_custom_call.1} parent=1 // pred_region
      _
    $region9: #{tpu_custom_call.1} parent=1 // pred_fallthru
      _
    // Predicated region
    $region10: #{tpu_custom_call.1} parent=1 // pred_check
      _
    $region11: #{tpu_custom_call.1} parent=1 // pred_check_branch
      %25 = sbr.rel (0) target = $region13
    $region12: #{tpu_custom_call.1} parent=1 // pred_region
      %s27 = ssub.s32 12288, 12288
      %28 = vsyncadd [#allocation6], %s27
      %s29 = sshll.u32 [#allocation5], 4
      %s30 = int_to_ptr.vmem [resolvable:$true] %s29
      %35 = dma.hbm_to_vmem [thread:$0]  %s2, 12288, %s30, [#allocation6], 256, 256, 16
    $region13: #{tpu_custom_call.1} parent=1 // pred_fallthru
      _
    // Predicated region
    $region14: #{tpu_custom_call.1} parent=1 // pred_check
      _
    $region15: #{tpu_custom_call.1} parent=1 // pred_check_branch
      %37 = sbr.rel (0) target = $region17
    $region16: #{tpu_custom_call.1} parent=1 // pred_region
      _
    $region17: #{tpu_custom_call.1} parent=1 // pred_fallthru
      _
    // Predicated region
    $region18: #{tpu_custom_call.1} parent=1 // pred_check
      _
    $region19: #{tpu_custom_call.1} parent=1 // pred_check_branch
      %39 = sbr.rel (0) target = $region21
    $region20: #{tpu_custom_call.1} parent=1 // pred_region
      %40 = dma.done [#allocation3], 128
    $region21: #{tpu_custom_call.1} parent=1 // pred_fallthru
      _
    // Predicated region
    $region22: #{tpu_custom_call.1} parent=1 // pred_check
      _
    $region23: #{tpu_custom_call.1} parent=1 // pred_check_branch
      %42 = sbr.rel (0) target = $region25
    $region24: #{tpu_custom_call.1} parent=1 // pred_region
      %43 = dma.done [#allocation6], 12288
    $region25: #{tpu_custom_call.1} parent=1 // pred_fallthru
      _
    %v44 = vld [vmem:[#allocation2] sm:$0xff]
    %v45 = vld [vmem:[#allocation5] sm:$0xff]
    %v46 = vld [vmem:[#allocation5 + $0x10] sm:$0xff]
    %v47 = vld [vmem:[#allocation5 + $0x8] sm:$0xff]
    %v48 = vld [vmem:[#allocation5 + $0x18] sm:$0xff]
    %v49 = vld [vmem:[#allocation5 + $0x28] sm:$0xff]
    %v50 = vld [vmem:[#allocation5 + $0x38] sm:$0xff]
    %v51 = vld [vmem:[#allocation5 + $0x48] sm:$0xff]
    %v52 = vld [vmem:[#allocation5 + $0x58] sm:$0xff]
    %v53 = vld [vmem:[#allocation5 + $0x68] sm:$0xff]
    %v54 = vld [vmem:[#allocation5 + $0x78] sm:$0xff]
    %v55 = vld [vmem:[#allocation5 + $0x88] sm:$0xff]
    %v56 = vld [vmem:[#allocation5 + $0x98] sm:$0xff]
    %v57 = vld [vmem:[#allocation5 + $0xa8] sm:$0xff]
    %v58 = vld [vmem:[#allocation5 + $0xb8] sm:$0xff]
    %v59 = vld [vmem:[#allocation5 + $0xc8] sm:$0xff]
    %v60 = vld [vmem:[#allocation5 + $0xd8] sm:$0xff]
    %v61 = vld [vmem:[#allocation5 + $0xe8] sm:$0xff]
    %v62 = vld [vmem:[#allocation5 + $0xf8] sm:$0xff]
    %v63 = vld [vmem:[#allocation5 + $0x100] sm:$0xff]
    %v64 = vld [vmem:[#allocation5 + $0x110] sm:$0xff]
    %v65 = vld [vmem:[#allocation5 + $0x120] sm:$0xff]
    %v66 = vld [vmem:[#allocation5 + $0x130] sm:$0xff]
    %v67 = vld [vmem:[#allocation5 + $0x140] sm:$0xff]
    %v68 = vld [vmem:[#allocation5 + $0x150] sm:$0xff]
    %v69 = vld [vmem:[#allocation5 + $0x160] sm:$0xff]
    %v70 = vld [vmem:[#allocation5 + $0x170] sm:$0xff]
    %v71 = vld [vmem:[#allocation5 + $0x180] sm:$0xff]
    %v72 = vld [vmem:[#allocation5 + $0x190] sm:$0xff]
    %v73 = vld [vmem:[#allocation5 + $0x1a0] sm:$0xff]
    %v74 = vld [vmem:[#allocation5 + $0x1b0] sm:$0xff]
    %v75 = vld [vmem:[#allocation5 + $0x1c0] sm:$0xff]
    %v76 = vld [vmem:[#allocation5 + $0x1d0] sm:$0xff]
    %v77 = vld [vmem:[#allocation5 + $0x1e0] sm:$0xff]
    %v78 = vld [vmem:[#allocation5 + $0x1f0] sm:$0xff]
    %v79 = vld [vmem:[#allocation5 + $0x108] sm:$0xff]
    %v80 = vld [vmem:[#allocation5 + $0x118] sm:$0xff]
    %v81 = vld [vmem:[#allocation5 + $0x128] sm:$0xff]
    %v82 = vld [vmem:[#allocation5 + $0x138] sm:$0xff]
    %v83 = vld [vmem:[#allocation5 + $0x148] sm:$0xff]
    %v84 = vld [vmem:[#allocation5 + $0x158] sm:$0xff]
    %v85 = vld [vmem:[#allocation5 + $0x168] sm:$0xff]
    %v86 = vld [vmem:[#allocation5 + $0x178] sm:$0xff]
    %v87 = vld [vmem:[#allocation5 + $0x188] sm:$0xff]
    %v88 = vld [vmem:[#allocation5 + $0x198] sm:$0xff]
    %v89 = vld [vmem:[#allocation5 + $0x1a8] sm:$0xff]
    %v90 = vld [vmem:[#allocation5 + $0x1b8] sm:$0xff]
    %v91 = vld [vmem:[#allocation5 + $0x1c8] sm:$0xff]
    %v92 = vld [vmem:[#allocation5 + $0x1d8] sm:$0xff]
    %v93 = vld [vmem:[#allocation5 + $0x1e8] sm:$0xff]
    %v94 = vld [vmem:[#allocation5 + $0x1f8] sm:$0xff]
    %v95 = vld [vmem:[#allocation5 + $0x200] sm:$0xff]
    %v96 = vld [vmem:[#allocation5 + $0x210] sm:$0xff]
    %v97 = vld [vmem:[#allocation5 + $0x220] sm:$0xff]
    %v98 = vld [vmem:[#allocation5 + $0x230] sm:$0xff]
    %v99 = vld [vmem:[#allocation5 + $0x240] sm:$0xff]
    %v100 = vld [vmem:[#allocation5 + $0x250] sm:$0xff]
    %v101 = vld [vmem:[#allocation5 + $0x260] sm:$0xff]
    %v102 = vld [vmem:[#allocation5 + $0x270] sm:$0xff]
    %v103 = vld [vmem:[#allocation5 + $0x280] sm:$0xff]
    %v104 = vld [vmem:[#allocation5 + $0x290] sm:$0xff]
    %v105 = vld [vmem:[#allocation5 + $0x2a0] sm:$0xff]
    %v106 = vld [vmem:[#allocation5 + $0x2b0] sm:$0xff]
    %v107 = vld [vmem:[#allocation5 + $0x2c0] sm:$0xff]
    %v108 = vld [vmem:[#allocation5 + $0x2d0] sm:$0xff]
    %v109 = vld [vmem:[#allocation5 + $0x2e0] sm:$0xff]
    %v110 = vld [vmem:[#allocation5 + $0x2f0] sm:$0xff]
    %v111 = vld [vmem:[#allocation5 + $0x208] sm:$0xff]
    %v112 = vld [vmem:[#allocation5 + $0x218] sm:$0xff]
    %v113 = vld [vmem:[#allocation5 + $0x228] sm:$0xff]
    %v114 = vld [vmem:[#allocation5 + $0x238] sm:$0xff]
    %v115 = vld [vmem:[#allocation5 + $0x248] sm:$0xff]
    %v116 = vld [vmem:[#allocation5 + $0x258] sm:$0xff]
    %v117 = vld [vmem:[#allocation5 + $0x268] sm:$0xff]
    %v118 = vld [vmem:[#allocation5 + $0x278] sm:$0xff]
    %v119 = vld [vmem:[#allocation5 + $0x288] sm:$0xff]
    %v120 = vld [vmem:[#allocation5 + $0x298] sm:$0xff]
    %v121 = vld [vmem:[#allocation5 + $0x2a8] sm:$0xff]
    %v122 = vld [vmem:[#allocation5 + $0x2b8] sm:$0xff]
    %v123 = vld [vmem:[#allocation5 + $0x2c8] sm:$0xff]
    %v124 = vld [vmem:[#allocation5 + $0x2d8] sm:$0xff]
    %v125 = vld [vmem:[#allocation5 + $0x2e8] sm:$0xff]
    %v126 = vld [vmem:[#allocation5 + $0x2f8] sm:$0xff]
    %v127 = vld [vmem:[%s3] ss:$0 sm:$0xff]
    %v128 = vld [vmem:[%s3 + $0x8] ss:$0 sm:$0xff]
    %v129 = vld [vmem:[%s3 + $0x1] ss:$0 sm:$0xff]
    %v130 = vld [vmem:[%s3 + $0x9] ss:$0 sm:$0xff]
    %v131 = vld [vmem:[%s3 + $0x2] ss:$0 sm:$0xff]
    %v132 = vld [vmem:[%s3 + $0xa] ss:$0 sm:$0xff]
    %vm133 = vcmask 130048
    %v135 = vsel %vm133, %v44, 0
    %137 = vmatprep.subr.mxu0 0.0
    %138 = vmatpush1.msra.mxu0 %v45
    %139 = vmatprep.subr.mxu0 0.0
    %140 = vmatpush1.msra.mxu0 %v46
    %141 = vmatprep.subr.mxu0 0.0
    %142 = vmatpush1.msra.mxu0 0.0
    %143 = vmatprep.subr.mxu0 0.0
    %144 = vmatpush1.msra.mxu0 0.0
    %145 = vmatprep.subr.mxu0 0.0
    %146 = vmatpush1.msra.mxu0 0.0
    %147 = vmatprep.subr.mxu0 0.0
    %148 = vmatpush1.msra.mxu0 0.0
    %149 = vmatprep.subr.mxu0 0.0
    %150 = vmatpush1.msra.mxu0 0.0
    %151 = vmatprep.subr.mxu0 0.0
    %152 = vmatpush1.msra.mxu0 0.0
    %153 = vmatprep.subr.mxu0 0.0
    %154 = vmatpush1.msra.mxu0 0.0
    %155 = vmatprep.subr.mxu0 0.0
    %156 = vmatpush1.msra.mxu0 0.0
    %157 = vmatprep.subr.mxu0 0.0
    %158 = vmatpush1.msra.mxu0 0.0
    %159 = vmatprep.subr.mxu0 0.0
    %160 = vmatpush1.msra.mxu0 0.0
    %161 = vmatprep.subr.mxu0 0.0
    %162 = vmatpush1.msra.mxu0 0.0
    %163 = vmatprep.subr.mxu0 0.0
    %164 = vmatpush1.msra.mxu0 0.0
    %165 = vmatprep.subr.mxu0 0.0
    %166 = vmatpush1.msra.mxu0 0.0
    %167 = vmatprep.subr.mxu0 0.0
    %168 = vmatpush1.msra.mxu0 0.0
    %169 = vmatprep.subr.mxu0 0.0
    %170 = vmatpush1.msra.mxu0 0.0
    %171 = vmatprep.subr.mxu0 0.0
    %172 = vmatpush1.msra.mxu0 0.0
    %173 = vmatprep.subr.mxu0 0.0
    %174 = vmatpush1.msra.mxu0 0.0
    %175 = vmatprep.subr.mxu0 0.0
    %176 = vmatpush1.msra.mxu0 0.0
    %177 = vmatprep.subr.mxu0 0.0
    %178 = vmatpush1.msra.mxu0 0.0
    %179 = vmatprep.subr.mxu0 0.0
    %180 = vmatpush1.msra.mxu0 0.0
    %181 = vmatprep.subr.mxu0 0.0
    %182 = vmatpush1.msra.mxu0 0.0
    %183 = vmatprep.subr.mxu0 0.0
    %184 = vmatpush1.msra.mxu0 0.0
    %185 = vmatprep.subr.mxu0 0.0
    %186 = vmatpush1.msra.mxu0 0.0
    %187 = vmatprep.subr.mxu0 0.0
    %188 = vmatpush1.msra.mxu0 0.0
    %189 = vmatprep.subr.mxu0 0.0
    %190 = vmatpush1.msra.mxu0 0.0
    %191 = vmatprep.subr.mxu0 0.0
    %192 = vmatpush1.msra.mxu0 0.0
    %193 = vmatprep.subr.mxu0 0.0
    %194 = vmatpush1.msra.mxu0 0.0
    %195 = vmatprep.subr.mxu0 0.0
    %196 = vmatpush1.msra.mxu0 0.0
    %197 = vmatprep.subr.mxu0 0.0
    %198 = vmatpush1.msra.mxu0 0.0
    %199 = vmatprep.subr.mxu0 0.0
    %200 = vmatpush1.msra.mxu0 0.0
    %201 = vmatprep.mubr.f32.mxu0 0.0
    %202 = vmatmul.mubr.f32.gmra.mrb[0].mxu0 %v135
    %v203 = vpop.f32.mrb[0].mxu0
    %v204 = vadd.f32 %v127, %v203
    %v205 = vpop.f32.mrb[0].mxu0
    %206 = vdwg.mxu0
    %v207 = vmax.f32 %v204, 0.0
    %208 = vmatprep.subr.mxu0 0.0
    %209 = vmatpush1.msra.mxu0 %v47
    %210 = vmatprep.subr.mxu0 0.0
    %211 = vmatpush1.msra.mxu0 %v48
    %212 = vmatprep.subr.mxu0 0.0
    %213 = vmatpush1.msra.mxu0 %v49
    %214 = vmatprep.subr.mxu0 0.0
    %215 = vmatpush1.msra.mxu0 %v50
    %216 = vmatprep.subr.mxu0 0.0
    %217 = vmatpush1.msra.mxu0 %v51
    %218 = vmatprep.subr.mxu0 0.0
    %219 = vmatpush1.msra.mxu0 %v52
    %220 = vmatprep.subr.mxu0 0.0
    %221 = vmatpush1.msra.mxu0 %v53
    %222 = vmatprep.subr.mxu0 0.0
    %223 = vmatpush1.msra.mxu0 %v54
    %224 = vmatprep.subr.mxu0 0.0
    %225 = vmatpush1.msra.mxu0 %v55
    %226 = vmatprep.subr.mxu0 0.0
    %227 = vmatpush1.msra.mxu0 %v56
    %228 = vmatprep.subr.mxu0 0.0
    %229 = vmatpush1.msra.mxu0 %v57
    %230 = vmatprep.subr.mxu0 0.0
    %231 = vmatpush1.msra.mxu0 %v58
    %232 = vmatprep.subr.mxu0 0.0
    %233 = vmatpush1.msra.mxu0 %v59
    %234 = vmatprep.subr.mxu0 0.0
    %235 = vmatpush1.msra.mxu0 %v60
    %236 = vmatprep.subr.mxu0 0.0
    %237 = vmatpush1.msra.mxu0 %v61
    %238 = vmatprep.subr.mxu0 0.0
    %239 = vmatpush1.msra.mxu0 %v62
    %240 = vmatprep.subr.mxu0 0.0
    %241 = vmatpush1.msra.mxu0 0.0
    %242 = vmatprep.subr.mxu0 0.0
    %243 = vmatpush1.msra.mxu0 0.0
    %244 = vmatprep.subr.mxu0 0.0
    %245 = vmatpush1.msra.mxu0 0.0
    %246 = vmatprep.subr.mxu0 0.0
    %247 = vmatpush1.msra.mxu0 0.0
    %248 = vmatprep.subr.mxu0 0.0
    %249 = vmatpush1.msra.mxu0 0.0
    %250 = vmatprep.subr.mxu0 0.0
    %251 = vmatpush1.msra.mxu0 0.0
    %252 = vmatprep.subr.mxu0 0.0
    %253 = vmatpush1.msra.mxu0 0.0
    %254 = vmatprep.subr.mxu0 0.0
    %255 = vmatpush1.msra.mxu0 0.0
    %256 = vmatprep.subr.mxu0 0.0
    %257 = vmatpush1.msra.mxu0 0.0
    %258 = vmatprep.subr.mxu0 0.0
    %259 = vmatpush1.msra.mxu0 0.0
    %260 = vmatprep.subr.mxu0 0.0
    %261 = vmatpush1.msra.mxu0 0.0
    %262 = vmatprep.subr.mxu0 0.0
    %263 = vmatpush1.msra.mxu0 0.0
    %264 = vmatprep.subr.mxu0 0.0
    %265 = vmatpush1.msra.mxu0 0.0
    %266 = vmatprep.subr.mxu0 0.0
    %267 = vmatpush1.msra.mxu0 0.0
    %268 = vmatprep.subr.mxu0 0.0
    %269 = vmatpush1.msra.mxu0 0.0
    %270 = vmatprep.subr.mxu0 0.0
    %271 = vmatpush1.msra.mxu0 0.0
    %272 = vmatprep.mubr.f32.mxu0 0.0
    %273 = vmatmul.mubr.f32.gmra.mrb[0].mxu0 %v207
    %v274 = vpop.f32.mrb[0].mxu0
    %v275 = vadd.f32 %v128, %v274
    %v276 = vpop.f32.mrb[0].mxu0
    %277 = vdwg.mxu0
    %v278 = vmax.f32 %v275, 0.0
    %279 = vmatprep.subr.mxu0 0.0
    %280 = vmatpush1.msra.mxu0 %v63
    %281 = vmatprep.subr.mxu0 0.0
    %282 = vmatpush1.msra.mxu0 %v64
    %283 = vmatprep.subr.mxu0 0.0
    %284 = vmatpush1.msra.mxu0 %v65
    %285 = vmatprep.subr.mxu0 0.0
    %286 = vmatpush1.msra.mxu0 %v66
    %287 = vmatprep.subr.mxu0 0.0
    %288 = vmatpush1.msra.mxu0 %v67
    %289 = vmatprep.subr.mxu0 0.0
    %290 = vmatpush1.msra.mxu0 %v68
    %291 = vmatprep.subr.mxu0 0.0
    %292 = vmatpush1.msra.mxu0 %v69
    %293 = vmatprep.subr.mxu0 0.0
    %294 = vmatpush1.msra.mxu0 %v70
    %295 = vmatprep.subr.mxu0 0.0
    %296 = vmatpush1.msra.mxu0 %v71
    %297 = vmatprep.subr.mxu0 0.0
    %298 = vmatpush1.msra.mxu0 %v72
    %299 = vmatprep.subr.mxu0 0.0
    %300 = vmatpush1.msra.mxu0 %v73
    %301 = vmatprep.subr.mxu0 0.0
    %302 = vmatpush1.msra.mxu0 %v74
    %303 = vmatprep.subr.mxu0 0.0
    %304 = vmatpush1.msra.mxu0 %v75
    %305 = vmatprep.subr.mxu0 0.0
    %306 = vmatpush1.msra.mxu0 %v76
    %307 = vmatprep.subr.mxu0 0.0
    %308 = vmatpush1.msra.mxu0 %v77
    %309 = vmatprep.subr.mxu0 0.0
    %310 = vmatpush1.msra.mxu0 %v78
    %311 = vmatprep.subr.mxu0 0.0
    %312 = vmatpush1.msra.mxu0 0.0
    %313 = vmatprep.subr.mxu0 0.0
    %314 = vmatpush1.msra.mxu0 0.0
    %315 = vmatprep.subr.mxu0 0.0
    %316 = vmatpush1.msra.mxu0 0.0
    %317 = vmatprep.subr.mxu0 0.0
    %318 = vmatpush1.msra.mxu0 0.0
    %319 = vmatprep.subr.mxu0 0.0
    %320 = vmatpush1.msra.mxu0 0.0
    %321 = vmatprep.subr.mxu0 0.0
    %322 = vmatpush1.msra.mxu0 0.0
    %323 = vmatprep.subr.mxu0 0.0
    %324 = vmatpush1.msra.mxu0 0.0
    %325 = vmatprep.subr.mxu0 0.0
    %326 = vmatpush1.msra.mxu0 0.0
    %327 = vmatprep.subr.mxu0 0.0
    %328 = vmatpush1.msra.mxu0 0.0
    %329 = vmatprep.subr.mxu0 0.0
    %330 = vmatpush1.msra.mxu0 0.0
    %331 = vmatprep.subr.mxu0 0.0
    %332 = vmatpush1.msra.mxu0 0.0
    %333 = vmatprep.subr.mxu0 0.0
    %334 = vmatpush1.msra.mxu0 0.0
    %335 = vmatprep.subr.mxu0 0.0
    %336 = vmatpush1.msra.mxu0 0.0
    %337 = vmatprep.subr.mxu0 0.0
    %338 = vmatpush1.msra.mxu0 0.0
    %339 = vmatprep.subr.mxu0 0.0
    %340 = vmatpush1.msra.mxu0 0.0
    %341 = vmatprep.subr.mxu0 0.0
    %342 = vmatpush1.msra.mxu0 0.0
    %343 = vmatprep.mubr.f32.mxu0 0.0
    %344 = vmatmul.mubr.f32.gmra.mrb[0].mxu0 %v278
    %v345 = vpop.f32.mrb[0].mxu0
    %v346 = vadd.f32 %v129, %v345
    %v347 = vpop.f32.mrb[0].mxu0
    %348 = vdwg.mxu0
    %v349 = vlaneseq
    %v350 = vand.u32 %v349, 127
    %v351 = vld [vmem:[%s1] sm:$0xff]
    %352 = vset.pattern.permute.xlu0 0
    %353 = vperm.xlu0 %352, %v351
    %v354 = vpop.permute.xlu0 %353
    %vm355 = vcmp.eq.s32.totalorder %v350, %v354
    %v356 = vsel %vm355, 1, 0
    %v357 = vcvt.s32.f32 %v356
    %358 = vmatprep.subr.mxu0 0.0
    %359 = vmatpush1.msra.mxu0 %v79
    %360 = vmatprep.subr.mxu0 0.0
    %361 = vmatpush1.msra.mxu0 %v80
    %362 = vmatprep.subr.mxu0 0.0
    %363 = vmatpush1.msra.mxu0 %v81
    %364 = vmatprep.subr.mxu0 0.0
    %365 = vmatpush1.msra.mxu0 %v82
    %366 = vmatprep.subr.mxu0 0.0
    %367 = vmatpush1.msra.mxu0 %v83
    %368 = vmatprep.subr.mxu0 0.0
    %369 = vmatpush1.msra.mxu0 %v84
    %370 = vmatprep.subr.mxu0 0.0
    %371 = vmatpush1.msra.mxu0 %v85
    %372 = vmatprep.subr.mxu0 0.0
    %373 = vmatpush1.msra.mxu0 %v86
    %374 = vmatprep.subr.mxu0 0.0
    %375 = vmatpush1.msra.mxu0 %v87
    %376 = vmatprep.subr.mxu0 0.0
    %377 = vmatpush1.msra.mxu0 %v88
    %378 = vmatprep.subr.mxu0 0.0
    %379 = vmatpush1.msra.mxu0 %v89
    %380 = vmatprep.subr.mxu0 0.0
    %381 = vmatpush1.msra.mxu0 %v90
    %382 = vmatprep.subr.mxu0 0.0
    %383 = vmatpush1.msra.mxu0 %v91
    %384 = vmatprep.subr.mxu0 0.0
    %385 = vmatpush1.msra.mxu0 %v92
    %386 = vmatprep.subr.mxu0 0.0
    %387 = vmatpush1.msra.mxu0 %v93
    %388 = vmatprep.subr.mxu0 0.0
    %389 = vmatpush1.msra.mxu0 %v94
    %390 = vmatprep.subr.mxu0 0.0
    %391 = vmatpush1.msra.mxu0 0.0
    %392 = vmatprep.subr.mxu0 0.0
    %393 = vmatpush1.msra.mxu0 0.0
    %394 = vmatprep.subr.mxu0 0.0
    %395 = vmatpush1.msra.mxu0 0.0
    %396 = vmatprep.subr.mxu0 0.0
    %397 = vmatpush1.msra.mxu0 0.0
    %398 = vmatprep.subr.mxu0 0.0
    %399 = vmatpush1.msra.mxu0 0.0
    %400 = vmatprep.subr.mxu0 0.0
    %401 = vmatpush1.msra.mxu0 0.0
    %402 = vmatprep.subr.mxu0 0.0
    %403 = vmatpush1.msra.mxu0 0.0
    %404 = vmatprep.subr.mxu0 0.0
    %405 = vmatpush1.msra.mxu0 0.0
    %406 = vmatprep.subr.mxu0 0.0
    %407 = vmatpush1.msra.mxu0 0.0
    %408 = vmatprep.subr.mxu0 0.0
    %409 = vmatpush1.msra.mxu0 0.0
    %410 = vmatprep.subr.mxu0 0.0
    %411 = vmatpush1.msra.mxu0 0.0
    %412 = vmatprep.subr.mxu0 0.0
    %413 = vmatpush1.msra.mxu0 0.0
    %414 = vmatprep.subr.mxu0 0.0
    %415 = vmatpush1.msra.mxu0 0.0
    %416 = vmatprep.subr.mxu0 0.0
    %417 = vmatpush1.msra.mxu0 0.0
    %418 = vmatprep.subr.mxu0 0.0
    %419 = vmatpush1.msra.mxu0 0.0
    %420 = vmatprep.subr.mxu0 0.0
    %421 = vmatpush1.msra.mxu0 0.0
    %422 = vmatprep.mubr.f32.mxu0 0.0
    %423 = vmatmul.mubr.f32.gmra.mrb[0].mxu0 %v357
    %v424 = vpop.f32.mrb[0].mxu0
    %v425 = vadd.f32 %v130, %v424
    %v426 = vpop.f32.mrb[0].mxu0
    %427 = vdwg.mxu0
    %v428 = vmul.f32 %v346, %v425
    %429 = vmatprep.subr.mxu0 0.0
    %430 = vmatpush1.msra.mxu0 %v95
    %431 = vmatprep.subr.mxu0 0.0
    %432 = vmatpush1.msra.mxu0 %v96
    %433 = vmatprep.subr.mxu0 0.0
    %434 = vmatpush1.msra.mxu0 %v97
    %435 = vmatprep.subr.mxu0 0.0
    %436 = vmatpush1.msra.mxu0 %v98
    %437 = vmatprep.subr.mxu0 0.0
    %438 = vmatpush1.msra.mxu0 %v99
    %439 = vmatprep.subr.mxu0 0.0
    %440 = vmatpush1.msra.mxu0 %v100
    %441 = vmatprep.subr.mxu0 0.0
    %442 = vmatpush1.msra.mxu0 %v101
    %443 = vmatprep.subr.mxu0 0.0
    %444 = vmatpush1.msra.mxu0 %v102
    %445 = vmatprep.subr.mxu0 0.0
    %446 = vmatpush1.msra.mxu0 %v103
    %447 = vmatprep.subr.mxu0 0.0
    %448 = vmatpush1.msra.mxu0 %v104
    %449 = vmatprep.subr.mxu0 0.0
    %450 = vmatpush1.msra.mxu0 %v105
    %451 = vmatprep.subr.mxu0 0.0
    %452 = vmatpush1.msra.mxu0 %v106
    %453 = vmatprep.subr.mxu0 0.0
    %454 = vmatpush1.msra.mxu0 %v107
    %455 = vmatprep.subr.mxu0 0.0
    %456 = vmatpush1.msra.mxu0 %v108
    %457 = vmatprep.subr.mxu0 0.0
    %458 = vmatpush1.msra.mxu0 %v109
    %459 = vmatprep.subr.mxu0 0.0
    %460 = vmatpush1.msra.mxu0 %v110
    %461 = vmatprep.subr.mxu0 0.0
    %462 = vmatpush1.msra.mxu0 0.0
    %463 = vmatprep.subr.mxu0 0.0
    %464 = vmatpush1.msra.mxu0 0.0
    %465 = vmatprep.subr.mxu0 0.0
    %466 = vmatpush1.msra.mxu0 0.0
    %467 = vmatprep.subr.mxu0 0.0
    %468 = vmatpush1.msra.mxu0 0.0
    %469 = vmatprep.subr.mxu0 0.0
    %470 = vmatpush1.msra.mxu0 0.0
    %471 = vmatprep.subr.mxu0 0.0
    %472 = vmatpush1.msra.mxu0 0.0
    %473 = vmatprep.subr.mxu0 0.0
    %474 = vmatpush1.msra.mxu0 0.0
    %475 = vmatprep.subr.mxu0 0.0
    %476 = vmatpush1.msra.mxu0 0.0
    %477 = vmatprep.subr.mxu0 0.0
    %478 = vmatpush1.msra.mxu0 0.0
    %479 = vmatprep.subr.mxu0 0.0
    %480 = vmatpush1.msra.mxu0 0.0
    %481 = vmatprep.subr.mxu0 0.0
    %482 = vmatpush1.msra.mxu0 0.0
    %483 = vmatprep.subr.mxu0 0.0
    %484 = vmatpush1.msra.mxu0 0.0
    %485 = vmatprep.subr.mxu0 0.0
    %486 = vmatpush1.msra.mxu0 0.0
    %487 = vmatprep.subr.mxu0 0.0
    %488 = vmatpush1.msra.mxu0 0.0
    %489 = vmatprep.subr.mxu0 0.0
    %490 = vmatpush1.msra.mxu0 0.0
    %491 = vmatprep.subr.mxu0 0.0
    %492 = vmatpush1.msra.mxu0 0.0
    %493 = vmatprep.mubr.f32.mxu0 0.0
    %494 = vmatmul.mubr.f32.gmra.mrb[0].mxu0 %v428
    %v495 = vpop.f32.mrb[0].mxu0
    %v496 = vadd.f32 %v131, %v495
    %v497 = vpop.f32.mrb[0].mxu0
    %498 = vdwg.mxu0
    %v499 = vmax.f32 %v496, 0.0
    %500 = vmatprep.subr.mxu0 0.0
    %501 = vmatpush1.msra.mxu0 %v111
    %502 = vmatprep.subr.mxu0 0.0
    %503 = vmatpush1.msra.mxu0 %v112
    %504 = vmatprep.subr.mxu0 0.0
    %505 = vmatpush1.msra.mxu0 %v113
    %506 = vmatprep.subr.mxu0 0.0
    %507 = vmatpush1.msra.mxu0 %v114
    %508 = vmatprep.subr.mxu0 0.0
    %509 = vmatpush1.msra.mxu0 %v115
    %510 = vmatprep.subr.mxu0 0.0
    %511 = vmatpush1.msra.mxu0 %v116
    %512 = vmatprep.subr.mxu0 0.0
    %513 = vmatpush1.msra.mxu0 %v117
    %514 = vmatprep.subr.mxu0 0.0
    %515 = vmatpush1.msra.mxu0 %v118
    %516 = vmatprep.subr.mxu0 0.0
    %517 = vmatpush1.msra.mxu0 %v119
    %518 = vmatprep.subr.mxu0 0.0
    %519 = vmatpush1.msra.mxu0 %v120
    %520 = vmatprep.subr.mxu0 0.0
    %521 = vmatpush1.msra.mxu0 %v121
    %522 = vmatprep.subr.mxu0 0.0
    %523 = vmatpush1.msra.mxu0 %v122
    %524 = vmatprep.subr.mxu0 0.0
    %525 = vmatpush1.msra.mxu0 %v123
    %526 = vmatprep.subr.mxu0 0.0
    %527 = vmatpush1.msra.mxu0 %v124
    %528 = vmatprep.subr.mxu0 0.0
    %529 = vmatpush1.msra.mxu0 %v125
    %530 = vmatprep.subr.mxu0 0.0
    %531 = vmatpush1.msra.mxu0 %v126
    %532 = vmatprep.subr.mxu0 0.0
    %533 = vmatpush1.msra.mxu0 0.0
    %534 = vmatprep.subr.mxu0 0.0
    %535 = vmatpush1.msra.mxu0 0.0
    %536 = vmatprep.subr.mxu0 0.0
    %537 = vmatpush1.msra.mxu0 0.0
    %538 = vmatprep.subr.mxu0 0.0
    %539 = vmatpush1.msra.mxu0 0.0
    %540 = vmatprep.subr.mxu0 0.0
    %541 = vmatpush1.msra.mxu0 0.0
    %542 = vmatprep.subr.mxu0 0.0
    %543 = vmatpush1.msra.mxu0 0.0
    %544 = vmatprep.subr.mxu0 0.0
    %545 = vmatpush1.msra.mxu0 0.0
    %546 = vmatprep.subr.mxu0 0.0
    %547 = vmatpush1.msra.mxu0 0.0
    %548 = vmatprep.subr.mxu0 0.0
    %549 = vmatpush1.msra.mxu0 0.0
    %550 = vmatprep.subr.mxu0 0.0
    %551 = vmatpush1.msra.mxu0 0.0
    %552 = vmatprep.subr.mxu0 0.0
    %553 = vmatpush1.msra.mxu0 0.0
    %554 = vmatprep.subr.mxu0 0.0
    %555 = vmatpush1.msra.mxu0 0.0
    %556 = vmatprep.subr.mxu0 0.0
    %557 = vmatpush1.msra.mxu0 0.0
    %558 = vmatprep.subr.mxu0 0.0
    %559 = vmatpush1.msra.mxu0 0.0
    %560 = vmatprep.subr.mxu0 0.0
    %561 = vmatpush1.msra.mxu0 0.0
    %562 = vmatprep.subr.mxu0 0.0
    %563 = vmatpush1.msra.mxu0 0.0
    %564 = vmatprep.mubr.f32.mxu0 0.0
    %565 = vmatmul.mubr.f32.gmra.mrb[0].mxu0 %v499
    %v566 = vpop.f32.mrb[0].mxu0
    %v567 = vadd.f32 %v132, %v566
    %v568 = vpop.f32.mrb[0].mxu0
    %569 = vdwg.mxu0
    %570 = vst [vmem:[#allocation7] sm:$0xff] %v567
    // Predicated region
    $region26: #{tpu_custom_call.1} parent=1 // pred_check
      _
    $region27: #{tpu_custom_call.1} parent=1 // pred_check_branch
      %572 = sbr.rel (0) target = $region29
    $region28: #{tpu_custom_call.1} parent=1 // pred_region
      %s574 = ssub.s32 128, 128
      %575 = vsyncadd [#allocation4], %s574
      %s577 = sshll.u32 [#allocation7], 4
      %s578 = int_to_ptr.vmem [resolvable:$true] %s577
      %580 = dma.vmem_to_hbm [thread:$0]  %s578, 128, %s4, [#allocation4]
    $region29: #{tpu_custom_call.1} parent=1 // pred_fallthru
      _
    // Predicated region
    $region30: #{tpu_custom_call.1} parent=1 // pred_check
      _
    $region31: #{tpu_custom_call.1} parent=1 // pred_check_branch
      %582 = sbr.rel (0) target = $region33
    $region32: #{tpu_custom_call.1} parent=1 // pred_region
      %583 = dma.done [#allocation4], 128
    $region33: #{tpu_custom_call.1} parent=1 // pred_fallthru
      _
    %584 = vsyncpa [#allocation3], 1
    %585 = vsyncpa [#allocation6], 1
    %586 = vsyncpa [#allocation4], 1

</llo_original>
